<compile_context>
chip_gen: v7x
topology: tpu7x:2x2x1
jax: 0.10.0
libtpu: 0.0.40
codegen_flags: <defaults>
</compile_context>

<pallas_src>
import jax
import jax.numpy as jnp
from jax.experimental import pallas as pl
from jax.experimental.pallas import tpu as pltpu

# ---- problem sizes (small, consistent with the module) ----
B = 2            # batch
CIN = 4          # in_channels
COUT = 8         # out_channels
L = 16           # sequence length
K = 9            # kernel_size
PAD = K // 2     # 4
LOUT = L // 2    # after AvgPool1d(2)
NEG_SLOPE = 0.2
CPAD = 128       # lane-dense padded output width (valid cols = LOUT*COUT = 64)

IN_W = CIN * L       # 64   (flattened NCL input per batch row)
HID_W = L * COUT     # 128  (conv output, layout [l, o] -> l*COUT + o)
POOL_W = LOUT * COUT  # 64


def _lrelu(v):
    return jnp.where(v > 0, v, NEG_SLOPE * v)


def downsample_kernel(x_ref, w1_ref, b1_ref, w2_ref, b2_ref, pool_ref, o_ref):
    """Whole problem in one invocation (no grid). Three lane-dense matmuls, nothing else.

    x_ref    : (B, CIN*L)        flattened NCL input (reshape only, no transpose)
    w1_ref   : (CIN*L, L*COUT)   conv1 Toeplitz weights
    b1_ref   : (1, L*COUT)       conv1 bias broadcast over positions
    w2_ref   : (L*COUT, L*COUT)  conv2 Toeplitz weights
    b2_ref   : (1, L*COUT)
    pool_ref : (L*COUT, CPAD)    AvgPool1d(2) selection matrix (cols >= LOUT*COUT are zero)
    o_ref    : (B, CPAD)         lane-dense output; valid columns are [:, :LOUT*COUT]
    """
    h1 = _lrelu(jnp.dot(x_ref[...], w1_ref[...],
                        preferred_element_type=jnp.float32) + b1_ref[...])
    h2 = _lrelu(jnp.dot(h1, w2_ref[...],
                        preferred_element_type=jnp.float32) + b2_ref[...])
    o_ref[...] = jnp.dot(h2, pool_ref[...], preferred_element_type=jnp.float32)


def _conv1d_toeplitz(w, seq_len, in_layout):
    """Expand PyTorch Conv1d weights (Cout, Cin, K) into a Toeplitz matrix.

    Contraction index layout of the input rows:
      in_layout == "cl": row index = c*L + l   (matches reshape of an NCL tensor)
      in_layout == "lc": row index = l*C + c   (matches the [l, o] layout of conv outputs)
    Output column layout is always l_out*Cout + o.
    Out-of-range taps are zero (== zero padding of the sequence).
    """
    c_out, c_in, k_sz = w.shape
    pad = k_sz // 2
    li = jnp.arange(seq_len)
    k = li[:, None] - li[None, :] + pad                 # (L_in, L_out)
    valid = (k >= 0) & (k < k_sz)
    kc = jnp.clip(k, 0, k_sz - 1)
    taps = jnp.transpose(w, (1, 2, 0))[:, kc, :]        # (c_in, L_in, L_out, c_out)
    taps = jnp.where(valid[None, :, :, None], taps, 0.0)
    if in_layout == "lc":
        taps = jnp.transpose(taps, (1, 0, 2, 3))        # (L_in, c_in, L_out, c_out)
    return taps.reshape(c_in * seq_len, seq_len * c_out).astype(jnp.float32)


def _pool_matrix():
    """(L*COUT, CPAD) matrix implementing AvgPool1d(2) on the [l, o] layout."""
    r = jnp.arange(L * COUT)
    c = jnp.arange(POOL_W)
    rl, ro = r // COUT, r % COUT
    cp, co = c // COUT, c % COUT
    p = jnp.where((rl[:, None] // 2 == cp[None, :]) & (ro[:, None] == co[None, :]),
                  0.5, 0.0).astype(jnp.float32)
    return jnp.pad(p, ((0, 0), (0, CPAD - POOL_W)))     # lane-pad columns to 128


def prepare_params(w1, b1, w2, b2):
    """One-time (outside jit) expansion of Conv1d params into kernel-ready matrices."""
    w1_t = _conv1d_toeplitz(w1, L, "cl")                 # (64, 128)
    w2_t = _conv1d_toeplitz(w2, L, "lc")                 # (128, 128)
    b1_row = jnp.tile(b1.astype(jnp.float32), L).reshape(1, HID_W)
    b2_row = jnp.tile(b2.astype(jnp.float32), L).reshape(1, HID_W)
    pool = _pool_matrix()                                # (128, 128)
    return w1_t, b1_row, w2_t, b2_row, pool


@jax.jit
def downsample_block(x_ncl, w1_t, b1_row, w2_t, b2_row, pool):
    """x_ncl: (B, CIN, L) like PyTorch; returns (B, COUT, L//2) like PyTorch."""
    # NCL -> flat (B, CIN*L): contiguous reshape only, layout absorbed into w1_t.
    x_flat = x_ncl.astype(jnp.float32).reshape(B, IN_W)

    out = pl.pallas_call(
        downsample_kernel,
        out_shape=jax.ShapeDtypeStruct((B, CPAD), jnp.float32),
        in_specs=[pl.BlockSpec(memory_space=pltpu.MemorySpace.VMEM)] * 6,
        out_specs=pl.BlockSpec(memory_space=pltpu.MemorySpace.VMEM),
        compiler_params=pltpu.CompilerParams(vmem_limit_bytes=2 * 1024 * 1024),
    )(x_flat, w1_t, b1_row, w2_t, b2_row, pool)

    # (B, 128) -> valid cols -> (B, LOUT, COUT) -> (B, COUT, LOUT)
    out = out[:, :POOL_W].reshape(B, LOUT, COUT)
    return jnp.transpose(out, (0, 2, 1))


def reference(x_ncl, w1, b1, w2, b2):
    """Plain-JAX reference mirroring PyTorch semantics (for a correctness check)."""
    def conv1d(x, w, b):  # x: (B, C, L), w: (O, C, K)
        xp = jnp.pad(x, ((0, 0), (0, 0), (PAD, PAD)))
        cols = jnp.stack([xp[:, :, k:k + x.shape[2]] for k in range(K)], axis=-1)
        return jnp.einsum('bclk,ock->bol', cols, w) + b[None, :, None]

    def lrelu(v):
        return jnp.where(v > 0, v, NEG_SLOPE * v)

    h = lrelu(conv1d(x_ncl, w1, b1))
    h = lrelu(conv1d(h, w2, b2))
    return 0.5 * (h[:, :, 0::2] + h[:, :, 1::2])


if __name__ == "__main__":
    key = jax.random.PRNGKey(0)
    kx, k1, k2, k3, k4 = jax.random.split(key, 5)

    x = jax.random.normal(kx, (B, CIN, L), dtype=jnp.float32)
    # Deterministic synthetic parameters (PyTorch Conv1d shapes)
    w1 = jax.random.normal(k1, (COUT, CIN, K), dtype=jnp.float32) * 0.1
    b1 = jax.random.normal(k2, (COUT,), dtype=jnp.float32) * 0.1
    w2 = jax.random.normal(k3, (COUT, COUT, K), dtype=jnp.float32) * 0.1
    b2 = jax.random.normal(k4, (COUT,), dtype=jnp.float32) * 0.1

    params = prepare_params(w1, b1, w2, b2)
    y = downsample_block(x, *params)
    y = jax.block_until_ready(y)

    y_ref = reference(x, w1, b1, w2, b2)
    assert y.shape == (B, COUT, LOUT), y.shape
    assert jnp.allclose(y, y_ref, atol=1e-4, rtol=1e-4), \
        float(jnp.max(jnp.abs(y - y_ref)))

    print("KERNEL_OK")
</pallas_src>

<mosaic_0001>
module attributes {stable_mosaic.version = 11 : i64} {
  func.func @downsample_kernel(%arg0: memref<2x64xf32, #tpu.memory_space<vmem>>, %arg1: memref<64x128xf32, #tpu.memory_space<vmem>>, %arg2: memref<1x128xf32, #tpu.memory_space<vmem>>, %arg3: memref<128x128xf32, #tpu.memory_space<vmem>>, %arg4: memref<1x128xf32, #tpu.memory_space<vmem>>, %arg5: memref<128x128xf32, #tpu.memory_space<vmem>>, %arg6: memref<2x128xf32, #tpu.memory_space<vmem>>) attributes {dimension_semantics = [], scalar_prefetch = 0 : i64, scratch_operands = 0 : i64, tpu.core_type = #tpu.core_type<tc>} {
    %c0 = arith.constant 0 : index
    %c0_0 = arith.constant 0 : index
    %0 = vector.load %arg0[%c0, %c0_0] : memref<2x64xf32, #tpu.memory_space<vmem>>, vector<2x64xf32>
    %c0_1 = arith.constant 0 : index
    %c0_2 = arith.constant 0 : index
    %1 = vector.load %arg1[%c0_1, %c0_2] : memref<64x128xf32, #tpu.memory_space<vmem>>, vector<64x128xf32>
    %cst = arith.constant dense<0.000000e+00> : vector<2x128xf32>
    %2 = tpu.matmul %0, %1, %cst {dimension_numbers = #tpu.dot_dimension_numbers<[1], [0], [0], [1], [0, 0, 1, 1], [], []>} : vector<2x64xf32>, vector<64x128xf32>, vector<2x128xf32> -> vector<2x128xf32>
    %c0_3 = arith.constant 0 : index
    %c0_4 = arith.constant 0 : index
    %3 = vector.load %arg2[%c0_3, %c0_4] : memref<1x128xf32, #tpu.memory_space<vmem>>, vector<1x128xf32>
    %4 = vector.broadcast %3 : vector<1x128xf32> to vector<2x128xf32>
    %5 = arith.addf %2, %4 : vector<2x128xf32>
    %cst_5 = arith.constant 0.000000e+00 : f32
    %6 = vector.broadcast %cst_5 : f32 to vector<2x128xf32>
    %7 = arith.cmpf ogt, %5, %6 : vector<2x128xf32>
    %cst_6 = arith.constant 2.000000e-01 : f32
    %8 = vector.broadcast %cst_6 : f32 to vector<2x128xf32>
    %9 = arith.mulf %8, %5 : vector<2x128xf32>
    %10 = arith.select %7, %5, %9 : vector<2x128xi1>, vector<2x128xf32>
    %c0_7 = arith.constant 0 : index
    %c0_8 = arith.constant 0 : index
    %11 = vector.load %arg3[%c0_7, %c0_8] : memref<128x128xf32, #tpu.memory_space<vmem>>, vector<128x128xf32>
    %cst_9 = arith.constant dense<0.000000e+00> : vector<2x128xf32>
    %12 = tpu.matmul %10, %11, %cst_9 {dimension_numbers = #tpu.dot_dimension_numbers<[1], [0], [0], [1], [0, 0, 1, 1], [], []>} : vector<2x128xf32>, vector<128x128xf32>, vector<2x128xf32> -> vector<2x128xf32>
    %c0_10 = arith.constant 0 : index
    %c0_11 = arith.constant 0 : index
    %13 = vector.load %arg4[%c0_10, %c0_11] : memref<1x128xf32, #tpu.memory_space<vmem>>, vector<1x128xf32>
    %14 = vector.broadcast %13 : vector<1x128xf32> to vector<2x128xf32>
    %15 = arith.addf %12, %14 : vector<2x128xf32>
    %cst_12 = arith.constant 0.000000e+00 : f32
    %16 = vector.broadcast %cst_12 : f32 to vector<2x128xf32>
    %17 = arith.cmpf ogt, %15, %16 : vector<2x128xf32>
    %cst_13 = arith.constant 2.000000e-01 : f32
    %18 = vector.broadcast %cst_13 : f32 to vector<2x128xf32>
    %19 = arith.mulf %18, %15 : vector<2x128xf32>
    %20 = arith.select %17, %15, %19 : vector<2x128xi1>, vector<2x128xf32>
    %c0_14 = arith.constant 0 : index
    %c0_15 = arith.constant 0 : index
    %21 = vector.load %arg5[%c0_14, %c0_15] : memref<128x128xf32, #tpu.memory_space<vmem>>, vector<128x128xf32>
    %cst_16 = arith.constant dense<0.000000e+00> : vector<2x128xf32>
    %22 = tpu.matmul %20, %21, %cst_16 {dimension_numbers = #tpu.dot_dimension_numbers<[1], [0], [0], [1], [0, 0, 1, 1], [], []>} : vector<2x128xf32>, vector<128x128xf32>, vector<2x128xf32> -> vector<2x128xf32>
    %c0_17 = arith.constant 0 : index
    %c0_18 = arith.constant 0 : index
    %23 = vector.load %arg6[%c0_17, %c0_18] : memref<2x128xf32, #tpu.memory_space<vmem>>, vector<2x128xf32>
    tpu.vector_store %arg6[%c0_17, %c0_18], %22 {strides = array<i32>} : memref<2x128xf32, #tpu.memory_space<vmem>>, vector<2x128xf32>,
    return
  }
}

</mosaic_0001>

<llo_original>
// kernel: downsample_block.1
$region0: #{downsample_block.1}
  #allocation0 [shape = 'u32[]', space=smem, size = 0x4, offset = 0x4, fixed_abs, tag = 'smem constant byte address 0x4 - core index']
  #allocation1 [shape = 'u32[144,128]{1,0:T(1,128)}', space=vmem, size = 0x12000, scoped, tag = 'internal scratch']
  %s0 = inlined_call_operand.vmem [shape: f32[2,64], index: 0, kind: input, shape index: {}]
  %s1 = inlined_call_operand.hbm [shape: f32[64,128], index: 1, kind: input, shape index: {}]
  %s2 = inlined_call_operand.vmem [shape: f32[1,128], index: 2, kind: input, shape index: {}]
  %s3 = inlined_call_operand.hbm [shape: f32[128,128], index: 3, kind: input, shape index: {}]
  %s4 = inlined_call_operand.vmem [shape: f32[1,128], index: 4, kind: input, shape index: {}]
  %s5 = inlined_call_operand.hbm [shape: f32[128,128], index: 5, kind: input, shape index: {}]
  %s6 = inlined_call_operand.vmem [shape: f32[2,128], index: 6, kind: output, shape index: {}]
  %s7 = sld [smem:[#allocation0]]
  $region46: #{downsample_block.1} parent=0
    _
  %s9 = ssub.s32 1, %s7
  %s10 = scalar_select 0, %s9, %s7
  $region1: #{downsample_block.1} parent=0
    #allocation2 [shape = 'u8[32768]{0}', space=vmem, size = 0x8000, scoped, tag = 'input window, operand 1, single buffered']
    #allocation3 [shape = 's32[1]{0}', space=sflag, size = 0x4, scoped, tag = 'scoped memory for downsample_block.1']
    #allocation4 [shape = 'u8[65536]{0}', space=vmem, size = 0x10000, scoped, tag = 'input window, operand 3, single buffered']
    #allocation5 [shape = 's32[1]{0}', space=sflag, size = 0x4, scoped, tag = 'scoped memory for downsample_block.1']
    #allocation6 [shape = 'u8[65536]{0}', space=vmem, size = 0x10000, scoped, tag = 'input window, operand 5, single buffered']
    %11 = vsyncpa [#allocation3], 0
    %12 = vsyncpa [#allocation5], 0
    // Predicated region
    $region2: #{downsample_block.1} parent=1 // pred_check
      _
    $region3: #{downsample_block.1} parent=1 // pred_check_branch
      %14 = sbr.rel (0) target = $region5
    $region4: #{downsample_block.1} parent=1 // pred_region
      _
    $region5: #{downsample_block.1} parent=1 // pred_fallthru
      _
    // Predicated region
    $region6: #{downsample_block.1} parent=1 // pred_check
      _
    $region7: #{downsample_block.1} parent=1 // pred_check_branch
      %16 = sbr.rel (0) target = $region9
    $region8: #{downsample_block.1} parent=1 // pred_region
      %s18 = ssub.s32 1024, 1024
      %19 = vsyncadd [#allocation3], %s18
      %s20 = sshll.u32 [#allocation2], 4
      %s21 = int_to_ptr.vmem [resolvable:$true] %s20
      %26 = dma.hbm_to_vmem [thread:$0]  %s1, 1024, %s21, [#allocation3], 128, 128, 8
    $region9: #{downsample_block.1} parent=1 // pred_fallthru
      _
    // Predicated region
    $region10: #{downsample_block.1} parent=1 // pred_check
      _
    $region11: #{downsample_block.1} parent=1 // pred_check_branch
      %28 = sbr.rel (0) target = $region13
    $region12: #{downsample_block.1} parent=1 // pred_region
      _
    $region13: #{downsample_block.1} parent=1 // pred_fallthru
      _
    // Predicated region
    $region14: #{downsample_block.1} parent=1 // pred_check
      _
    $region15: #{downsample_block.1} parent=1 // pred_check_branch
      %30 = sbr.rel (0) target = $region17
    $region16: #{downsample_block.1} parent=1 // pred_region
      %s32 = ssub.s32 2048, 2048
      %33 = vsyncadd [#allocation5], %s32
      %s34 = sshll.u32 [#allocation4], 4
      %s35 = int_to_ptr.vmem [resolvable:$true] %s34
      %40 = dma.hbm_to_vmem [thread:$0]  %s3, 2048, %s35, [#allocation5], 128, 128, 8
    $region17: #{downsample_block.1} parent=1 // pred_fallthru
      _
    // Predicated region
    $region18: #{downsample_block.1} parent=1 // pred_check
      _
    $region19: #{downsample_block.1} parent=1 // pred_check_branch
      %42 = sbr.rel (0) target = $region21
    $region20: #{downsample_block.1} parent=1 // pred_region
      _
    $region21: #{downsample_block.1} parent=1 // pred_fallthru
      _
    // Predicated region
    $region22: #{downsample_block.1} parent=1 // pred_check
      _
    $region23: #{downsample_block.1} parent=1 // pred_check_branch
      %44 = sbr.rel (0) target = $region25
    $region24: #{downsample_block.1} parent=1 // pred_region
      %s46 = ssub.s32 2048, 2048
      %47 = vsyncadd [#allocation5], %s46
      %s48 = sshll.u32 [#allocation6], 4
      %s49 = int_to_ptr.vmem [resolvable:$true] %s48
      %54 = dma.hbm_to_vmem [thread:$0]  %s5, 2048, %s49, [#allocation5], 128, 128, 8
    $region25: #{downsample_block.1} parent=1 // pred_fallthru
      _
    // Predicated region
    $region26: #{downsample_block.1} parent=1 // pred_check
      _
    $region27: #{downsample_block.1} parent=1 // pred_check_branch
      %56 = sbr.rel (0) target = $region29
    $region28: #{downsample_block.1} parent=1 // pred_region
      %57 = dma.done [#allocation3], 1024
    $region29: #{downsample_block.1} parent=1 // pred_fallthru
      _
    // Predicated region
    $region30: #{downsample_block.1} parent=1 // pred_check
      _
    $region31: #{downsample_block.1} parent=1 // pred_check_branch
      %59 = sbr.rel (0) target = $region33
    $region32: #{downsample_block.1} parent=1 // pred_region
      %60 = dma.done [#allocation5], 2048
    $region33: #{downsample_block.1} parent=1 // pred_fallthru
      _
    // Predicated region
    $region34: #{downsample_block.1} parent=1 // pred_check
      _
    $region35: #{downsample_block.1} parent=1 // pred_check_branch
      %62 = sbr.rel (0) target = $region37
    $region36: #{downsample_block.1} parent=1 // pred_region
      %63 = dma.done [#allocation5], 2048
    $region37: #{downsample_block.1} parent=1 // pred_fallthru
      _
    %v64 = vld [vmem:[%s0] sm:$0x3]
    %v65 = vld [vmem:[#allocation2] sm:$0xff]
    %v66 = vld [vmem:[#allocation2 + $0x8] sm:$0xff]
    %v67 = vld [vmem:[#allocation2 + $0x10] sm:$0xff]
    %v68 = vld [vmem:[#allocation2 + $0x18] sm:$0xff]
    %v69 = vld [vmem:[#allocation2 + $0x20] sm:$0xff]
    %v70 = vld [vmem:[#allocation2 + $0x28] sm:$0xff]
    %v71 = vld [vmem:[#allocation2 + $0x30] sm:$0xff]
    %v72 = vld [vmem:[#allocation2 + $0x38] sm:$0xff]
    %v73 = vld [vmem:[%s2] sm:$0x1]
    %v75 = vlaneseq
    %v76 = vshrl.u32 %v75, 7
    %v77 = vsub.s32 0, %v76
    %v78 = vrot.slane %v73, %v77
    %vm80 = vcmask 523264
    %v82 = vsel %vm80, %v64, 0
    %84 = vmatprep.subr.mxu0 0.0
    %85 = vmatpush1.msra.mxu0 %v65
    %86 = vmatprep.subr.mxu0 0.0
    %87 = vmatpush1.msra.mxu0 %v66
    %88 = vmatprep.subr.mxu0 0.0
    %89 = vmatpush1.msra.mxu0 %v67
    %90 = vmatprep.subr.mxu0 0.0
    %91 = vmatpush1.msra.mxu0 %v68
    %92 = vmatprep.subr.mxu0 0.0
    %93 = vmatpush1.msra.mxu0 %v69
    %94 = vmatprep.subr.mxu0 0.0
    %95 = vmatpush1.msra.mxu0 %v70
    %96 = vmatprep.subr.mxu0 0.0
    %97 = vmatpush1.msra.mxu0 %v71
    %98 = vmatprep.subr.mxu0 0.0
    %99 = vmatpush1.msra.mxu0 %v72
    %100 = vmatprep.subr.mxu0 0.0
    %101 = vmatpush1.msra.mxu0 0.0
    %102 = vmatprep.subr.mxu0 0.0
    %103 = vmatpush1.msra.mxu0 0.0
    %104 = vmatprep.subr.mxu0 0.0
    %105 = vmatpush1.msra.mxu0 0.0
    %106 = vmatprep.subr.mxu0 0.0
    %107 = vmatpush1.msra.mxu0 0.0
    %108 = vmatprep.subr.mxu0 0.0
    %109 = vmatpush1.msra.mxu0 0.0
    %110 = vmatprep.subr.mxu0 0.0
    %111 = vmatpush1.msra.mxu0 0.0
    %112 = vmatprep.subr.mxu0 0.0
    %113 = vmatpush1.msra.mxu0 0.0
    %114 = vmatprep.subr.mxu0 0.0
    %115 = vmatpush1.msra.mxu0 0.0
    %116 = vmatprep.subr.mxu0 0.0
    %117 = vmatpush1.msra.mxu0 0.0
    %118 = vmatprep.subr.mxu0 0.0
    %119 = vmatpush1.msra.mxu0 0.0
    %120 = vmatprep.subr.mxu0 0.0
    %121 = vmatpush1.msra.mxu0 0.0
    %122 = vmatprep.subr.mxu0 0.0
    %123 = vmatpush1.msra.mxu0 0.0
    %124 = vmatprep.subr.mxu0 0.0
    %125 = vmatpush1.msra.mxu0 0.0
    %126 = vmatprep.subr.mxu0 0.0
    %127 = vmatpush1.msra.mxu0 0.0
    %128 = vmatprep.subr.mxu0 0.0
    %129 = vmatpush1.msra.mxu0 0.0
    %130 = vmatprep.subr.mxu0 0.0
    %131 = vmatpush1.msra.mxu0 0.0
    %132 = vmatprep.subr.mxu0 0.0
    %133 = vmatpush1.msra.mxu0 0.0
    %134 = vmatprep.subr.mxu0 0.0
    %135 = vmatpush1.msra.mxu0 0.0
    %136 = vmatprep.subr.mxu0 0.0
    %137 = vmatpush1.msra.mxu0 0.0
    %138 = vmatprep.subr.mxu0 0.0
    %139 = vmatpush1.msra.mxu0 0.0
    %140 = vmatprep.subr.mxu0 0.0
    %141 = vmatpush1.msra.mxu0 0.0
    %142 = vmatprep.subr.mxu0 0.0
    %143 = vmatpush1.msra.mxu0 0.0
    %144 = vmatprep.subr.mxu0 0.0
    %145 = vmatpush1.msra.mxu0 0.0
    %146 = vmatprep.subr.mxu0 0.0
    %147 = vmatpush1.msra.mxu0 0.0
    %148 = vmatprep.mubr.f32.mxu0 0.0
    %149 = vmatmul.mubr.f32.gmra.mrb[0].mxu0 %v82
    %v150 = vpop.f32.mrb[0].mxu0
    %v151 = vadd.f32 %v78, %v150
    %v152 = vpop.f32.mrb[0].mxu0
    %153 = vdwg.mxu0
    %vm154 = vcmp.gt.f32.partialorder %v151, 0.0
    %v155 = vmul.f32 %v151, 0.2
    %v156 = vsel %vm154, %v151, %v155
    %v157 = vld [vmem:[#allocation4] sm:$0xff]
    %v158 = vld [vmem:[#allocation4 + $0x8] sm:$0xff]
    %v159 = vld [vmem:[#allocation4 + $0x10] sm:$0xff]
    %v160 = vld [vmem:[#allocation4 + $0x18] sm:$0xff]
    %v161 = vld [vmem:[#allocation4 + $0x20] sm:$0xff]
    %v162 = vld [vmem:[#allocation4 + $0x28] sm:$0xff]
    %v163 = vld [vmem:[#allocation4 + $0x30] sm:$0xff]
    %v164 = vld [vmem:[#allocation4 + $0x38] sm:$0xff]
    %v165 = vld [vmem:[#allocation4 + $0x40] sm:$0xff]
    %v166 = vld [vmem:[#allocation4 + $0x48] sm:$0xff]
    %v167 = vld [vmem:[#allocation4 + $0x50] sm:$0xff]
    %v168 = vld [vmem:[#allocation4 + $0x58] sm:$0xff]
    %v169 = vld [vmem:[#allocation4 + $0x60] sm:$0xff]
    %v170 = vld [vmem:[#allocation4 + $0x68] sm:$0xff]
    %v171 = vld [vmem:[#allocation4 + $0x70] sm:$0xff]
    %v172 = vld [vmem:[#allocation4 + $0x78] sm:$0xff]
    %v173 = vld [vmem:[%s4] sm:$0x1]
    %v175 = vlaneseq
    %v176 = vshrl.u32 %v175, 7
    %v177 = vsub.s32 0, %v176
    %v178 = vrot.slane %v173, %v177
    %180 = vmatprep.subr.mxu0 0.0
    %181 = vmatpush1.msra.mxu0 %v157
    %182 = vmatprep.subr.mxu0 0.0
    %183 = vmatpush1.msra.mxu0 %v158
    %184 = vmatprep.subr.mxu0 0.0
    %185 = vmatpush1.msra.mxu0 %v159
    %186 = vmatprep.subr.mxu0 0.0
    %187 = vmatpush1.msra.mxu0 %v160
    %188 = vmatprep.subr.mxu0 0.0
    %189 = vmatpush1.msra.mxu0 %v161
    %190 = vmatprep.subr.mxu0 0.0
    %191 = vmatpush1.msra.mxu0 %v162
    %192 = vmatprep.subr.mxu0 0.0
    %193 = vmatpush1.msra.mxu0 %v163
    %194 = vmatprep.subr.mxu0 0.0
    %195 = vmatpush1.msra.mxu0 %v164
    %196 = vmatprep.subr.mxu0 0.0
    %197 = vmatpush1.msra.mxu0 %v165
    %198 = vmatprep.subr.mxu0 0.0
    %199 = vmatpush1.msra.mxu0 %v166
    %200 = vmatprep.subr.mxu0 0.0
    %201 = vmatpush1.msra.mxu0 %v167
    %202 = vmatprep.subr.mxu0 0.0
    %203 = vmatpush1.msra.mxu0 %v168
    %204 = vmatprep.subr.mxu0 0.0
    %205 = vmatpush1.msra.mxu0 %v169
    %206 = vmatprep.subr.mxu0 0.0
    %207 = vmatpush1.msra.mxu0 %v170
    %208 = vmatprep.subr.mxu0 0.0
    %209 = vmatpush1.msra.mxu0 %v171
    %210 = vmatprep.subr.mxu0 0.0
    %211 = vmatpush1.msra.mxu0 %v172
    %212 = vmatprep.subr.mxu0 0.0
    %213 = vmatpush1.msra.mxu0 0.0
    %214 = vmatprep.subr.mxu0 0.0
    %215 = vmatpush1.msra.mxu0 0.0
    %216 = vmatprep.subr.mxu0 0.0
    %217 = vmatpush1.msra.mxu0 0.0
    %218 = vmatprep.subr.mxu0 0.0
    %219 = vmatpush1.msra.mxu0 0.0
    %220 = vmatprep.subr.mxu0 0.0
    %221 = vmatpush1.msra.mxu0 0.0
    %222 = vmatprep.subr.mxu0 0.0
    %223 = vmatpush1.msra.mxu0 0.0
    %224 = vmatprep.subr.mxu0 0.0
    %225 = vmatpush1.msra.mxu0 0.0
    %226 = vmatprep.subr.mxu0 0.0
    %227 = vmatpush1.msra.mxu0 0.0
    %228 = vmatprep.subr.mxu0 0.0
    %229 = vmatpush1.msra.mxu0 0.0
    %230 = vmatprep.subr.mxu0 0.0
    %231 = vmatpush1.msra.mxu0 0.0
    %232 = vmatprep.subr.mxu0 0.0
    %233 = vmatpush1.msra.mxu0 0.0
    %234 = vmatprep.subr.mxu0 0.0
    %235 = vmatpush1.msra.mxu0 0.0
    %236 = vmatprep.subr.mxu0 0.0
    %237 = vmatpush1.msra.mxu0 0.0
    %238 = vmatprep.subr.mxu0 0.0
    %239 = vmatpush1.msra.mxu0 0.0
    %240 = vmatprep.subr.mxu0 0.0
    %241 = vmatpush1.msra.mxu0 0.0
    %242 = vmatprep.subr.mxu0 0.0
    %243 = vmatpush1.msra.mxu0 0.0
    %244 = vmatprep.mubr.f32.mxu0 0.0
    %245 = vmatmul.mubr.f32.gmra.mrb[0].mxu0 %v156
    %v246 = vpop.f32.mrb[0].mxu0
    %v247 = vadd.f32 %v178, %v246
    %v248 = vpop.f32.mrb[0].mxu0
    %249 = vdwg.mxu0
    %vm250 = vcmp.gt.f32.partialorder %v247, 0.0
    %v251 = vmul.f32 %v247, 0.2
    %v252 = vsel %vm250, %v247, %v251
    %v253 = vld [vmem:[#allocation6] sm:$0xff]
    %v254 = vld [vmem:[#allocation6 + $0x8] sm:$0xff]
    %v255 = vld [vmem:[#allocation6 + $0x10] sm:$0xff]
    %v256 = vld [vmem:[#allocation6 + $0x18] sm:$0xff]
    %v257 = vld [vmem:[#allocation6 + $0x20] sm:$0xff]
    %v258 = vld [vmem:[#allocation6 + $0x28] sm:$0xff]
    %v259 = vld [vmem:[#allocation6 + $0x30] sm:$0xff]
    %v260 = vld [vmem:[#allocation6 + $0x38] sm:$0xff]
    %v261 = vld [vmem:[#allocation6 + $0x40] sm:$0xff]
    %v262 = vld [vmem:[#allocation6 + $0x48] sm:$0xff]
    %v263 = vld [vmem:[#allocation6 + $0x50] sm:$0xff]
    %v264 = vld [vmem:[#allocation6 + $0x58] sm:$0xff]
    %v265 = vld [vmem:[#allocation6 + $0x60] sm:$0xff]
    %v266 = vld [vmem:[#allocation6 + $0x68] sm:$0xff]
    %v267 = vld [vmem:[#allocation6 + $0x70] sm:$0xff]
    %v268 = vld [vmem:[#allocation6 + $0x78] sm:$0xff]
    %269 = vmatprep.subr.mxu0 0.0
    %270 = vmatpush1.msra.mxu0 %v253
    %271 = vmatprep.subr.mxu0 0.0
    %272 = vmatpush1.msra.mxu0 %v254
    %273 = vmatprep.subr.mxu0 0.0
    %274 = vmatpush1.msra.mxu0 %v255
    %275 = vmatprep.subr.mxu0 0.0
    %276 = vmatpush1.msra.mxu0 %v256
    %277 = vmatprep.subr.mxu0 0.0
    %278 = vmatpush1.msra.mxu0 %v257
    %279 = vmatprep.subr.mxu0 0.0
    %280 = vmatpush1.msra.mxu0 %v258
    %281 = vmatprep.subr.mxu0 0.0
    %282 = vmatpush1.msra.mxu0 %v259
    %283 = vmatprep.subr.mxu0 0.0
    %284 = vmatpush1.msra.mxu0 %v260
    %285 = vmatprep.subr.mxu0 0.0
    %286 = vmatpush1.msra.mxu0 %v261
    %287 = vmatprep.subr.mxu0 0.0
    %288 = vmatpush1.msra.mxu0 %v262
    %289 = vmatprep.subr.mxu0 0.0
    %290 = vmatpush1.msra.mxu0 %v263
    %291 = vmatprep.subr.mxu0 0.0
    %292 = vmatpush1.msra.mxu0 %v264
    %293 = vmatprep.subr.mxu0 0.0
    %294 = vmatpush1.msra.mxu0 %v265
    %295 = vmatprep.subr.mxu0 0.0
    %296 = vmatpush1.msra.mxu0 %v266
    %297 = vmatprep.subr.mxu0 0.0
    %298 = vmatpush1.msra.mxu0 %v267
    %299 = vmatprep.subr.mxu0 0.0
    %300 = vmatpush1.msra.mxu0 %v268
    %301 = vmatprep.subr.mxu0 0.0
    %302 = vmatpush1.msra.mxu0 0.0
    %303 = vmatprep.subr.mxu0 0.0
    %304 = vmatpush1.msra.mxu0 0.0
    %305 = vmatprep.subr.mxu0 0.0
    %306 = vmatpush1.msra.mxu0 0.0
    %307 = vmatprep.subr.mxu0 0.0
    %308 = vmatpush1.msra.mxu0 0.0
    %309 = vmatprep.subr.mxu0 0.0
    %310 = vmatpush1.msra.mxu0 0.0
    %311 = vmatprep.subr.mxu0 0.0
    %312 = vmatpush1.msra.mxu0 0.0
    %313 = vmatprep.subr.mxu0 0.0
    %314 = vmatpush1.msra.mxu0 0.0
    %315 = vmatprep.subr.mxu0 0.0
    %316 = vmatpush1.msra.mxu0 0.0
    %317 = vmatprep.subr.mxu0 0.0
    %318 = vmatpush1.msra.mxu0 0.0
    %319 = vmatprep.subr.mxu0 0.0
    %320 = vmatpush1.msra.mxu0 0.0
    %321 = vmatprep.subr.mxu0 0.0
    %322 = vmatpush1.msra.mxu0 0.0
    %323 = vmatprep.subr.mxu0 0.0
    %324 = vmatpush1.msra.mxu0 0.0
    %325 = vmatprep.subr.mxu0 0.0
    %326 = vmatpush1.msra.mxu0 0.0
    %327 = vmatprep.subr.mxu0 0.0
    %328 = vmatpush1.msra.mxu0 0.0
    %329 = vmatprep.subr.mxu0 0.0
    %330 = vmatpush1.msra.mxu0 0.0
    %331 = vmatprep.subr.mxu0 0.0
    %332 = vmatpush1.msra.mxu0 0.0
    %333 = vmatprep.mubr.f32.mxu0 0.0
    %334 = vmatmul.mubr.f32.gmra.mrb[0].mxu0 %v252
    %v335 = vpop.f32.mrb[0].mxu0
    %v336 = vadd.f32 0.0, %v335
    %v337 = vpop.f32.mrb[0].mxu0
    %338 = vdwg.mxu0
    %339 = vst [vmem:[%s6] sm:$0x3] %v336
    // Predicated region
    $region38: #{downsample_block.1} parent=1 // pred_check
      _
    $region39: #{downsample_block.1} parent=1 // pred_check_branch
      %341 = sbr.rel (0) target = $region41
    $region40: #{downsample_block.1} parent=1 // pred_region
      _
    $region41: #{downsample_block.1} parent=1 // pred_fallthru
      _
    // Predicated region
    $region42: #{downsample_block.1} parent=1 // pred_check
      _
    $region43: #{downsample_block.1} parent=1 // pred_check_branch
      %343 = sbr.rel (0) target = $region45
    $region44: #{downsample_block.1} parent=1 // pred_region
      _
    $region45: #{downsample_block.1} parent=1 // pred_fallthru
      _
    %344 = vsyncpa [#allocation3], 1
    %345 = vsyncpa [#allocation5], 1

</llo_original>
